<compile_context>
chip_gen: v7x
topology: tpu7x:2x2x1
jax: 0.10.0
libtpu: 0.0.40
codegen_flags: <defaults>
</compile_context>

<pallas_src>
import math
from functools import lru_cache

import numpy as np
import jax
import jax.numpy as jnp
from jax.experimental import pallas as pl
from jax.experimental.pallas import tpu as pltpu

_EPS = 1e-5
_INV_SQRT2 = 0.7071067811865476


# ----------------------------------------------------------------------------- in-kernel math
def _gelu(x):
    # erf-based GELU (torch.nn.GELU() default), Abramowitz-Stegun 7.1.26 erf.
    # exp + approximate reciprocal both issue on the EUP, not the VALU slots.
    a1, a2, a3, a4, a5 = 0.254829592, -0.284496736, 1.421413741, -1.453152027, 1.061405429
    p = 0.3275911
    z = x * _INV_SQRT2
    sgn = jnp.where(z >= 0.0, 1.0, -1.0)
    az = jnp.abs(z)
    t = pl.reciprocal(1.0 + p * az, approx=True)
    poly = ((((a5 * t + a4) * t + a3) * t + a2) * t + a1) * t
    erf = sgn * (1.0 - poly * jnp.exp(-az * az))
    return 0.5 * x * (1.0 + erf)


# ----------------------------------------------------------------------------- fused per-target kernel
def _fused_target_call(base, down_pack, up_packs):
    """GELU(base + sum of all incoming transition deltas) in one pallas_call.

    base:      (N, 1+L, Cj) f32 residual (class-token row included).
    down_pack: None or (patches_aug, w_aug):
               patches_aug (N, 1+L, K) f32 -- leading zero row (class slot),
               ones column(s) driving the folded bias row(s);
               w_aug (K, Cj) bf16 folded weight incl. bias row(s).
    up_packs:  list of (tok_aug, w_aug, u2_aug):
               tok_aug (N, Lin, Ci+1) f32 (ones column), w_aug (Ci+1, Cj) bf16,
               u2_aug (1+L, Lin) bf16 bilinear matrix with a zero top row.
    """
    n, lp1, cj = base.shape
    has_down = down_pack is not None
    n_up = len(up_packs)

    args = [base]
    in_specs = [pl.BlockSpec((1, lp1, cj), lambda b: (b, 0, 0))]
    if has_down:
        patches, w_aug = down_pack
        args += [patches, w_aug]
        in_specs += [pl.BlockSpec((1,) + patches.shape[1:], lambda b: (b, 0, 0)),
                     pl.BlockSpec(w_aug.shape, lambda b: (0, 0))]
    for tok, w_aug, u2 in up_packs:
        args += [tok, w_aug, u2]
        in_specs += [pl.BlockSpec((1,) + tok.shape[1:], lambda b: (b, 0, 0)),
                     pl.BlockSpec(w_aug.shape, lambda b: (0, 0)),
                     pl.BlockSpec(u2.shape, lambda b: (0, 0))]

    def kernel(*refs):
        base_ref, out_ref = refs[0], refs[-1]
        idx = 1
        terms = []
        if has_down:
            p_ref, w_ref = refs[idx], refs[idx + 1]
            idx += 2
            terms.append(jnp.dot(p_ref[0].astype(jnp.bfloat16), w_ref[...],
                                 preferred_element_type=jnp.float32))
        for _ in range(n_up):
            t_ref, w_ref, u_ref = refs[idx], refs[idx + 1], refs[idx + 2]
            idx += 3
            y = jnp.dot(t_ref[0].astype(jnp.bfloat16), w_ref[...],
                        preferred_element_type=jnp.float32)
            terms.append(jnp.dot(u_ref[...], y.astype(jnp.bfloat16),
                                 preferred_element_type=jnp.float32))
        delta = terms[0] if terms else jnp.zeros((lp1, cj), jnp.float32)
        for extra in terms[1:]:
            delta = delta + extra
        out_ref[0] = _gelu(base_ref[0] + delta)

    return pl.pallas_call(
        kernel,
        grid=(n,),
        in_specs=in_specs,
        out_specs=pl.BlockSpec((1, lp1, cj), lambda b: (b, 0, 0)),
        out_shape=jax.ShapeDtypeStruct((n, lp1, cj), jnp.float32),
        compiler_params=pltpu.CompilerParams(dimension_semantics=("parallel",)),
    )(*args)


# ----------------------------------------------------------------------------- bilinear matrices (cached)
def _bilinear_matrix_1d(p_in, p_out):
    # nn.Upsample(mode="bilinear", align_corners=False) 1-D interpolation matrix
    u = np.zeros((p_out, p_in), dtype=np.float32)
    scale = p_in / p_out
    for o in range(p_out):
        src = max((o + 0.5) * scale - 0.5, 0.0)
        i0 = int(np.floor(src))
        i1 = min(i0 + 1, p_in - 1)
        frac = src - i0
        u[o, i0] += 1.0 - frac
        u[o, i1] += frac
    return u


@lru_cache(maxsize=None)
def _bilinear_u2_aug(p_in, scale):
    """kron(u1, u1) per (P, scale), cached at first use, with a zero top row
    that generates the (untouched) class-token row of the delta for free."""
    u1 = _bilinear_matrix_1d(p_in, p_in * scale)
    u2 = np.kron(u1, u1)                                     # (Lout, Lin)
    u2 = np.concatenate([np.zeros((1, u2.shape[1]), np.float32), u2], axis=0)
    return jnp.asarray(u2, dtype=jnp.bfloat16)


# ----------------------------------------------------------------------------- parameters
class _KeyGen:
    def __init__(self, key):
        self.key = key

    def __call__(self):
        self.key, sub = jax.random.split(self.key)
        return sub


def make_params(key, stream_dims, new_stream_tokens):
    """Synthetic parameters; both raw (for the reference) and folded/augmented
    bf16 matmul weights (for the Pallas kernels) are stored."""
    kg = _KeyGen(key)
    n_cfg = len(stream_dims)

    def bn_folded(c):
        gamma = 1.0 + 0.1 * jax.random.normal(kg(), (c,), dtype=jnp.float32)
        beta = 0.1 * jax.random.normal(kg(), (c,), dtype=jnp.float32)
        mean = 0.1 * jax.random.normal(kg(), (c,), dtype=jnp.float32)
        var = jax.random.uniform(kg(), (c,), minval=0.5, maxval=1.5, dtype=jnp.float32)
        s = gamma / jnp.sqrt(var + _EPS)
        return s.reshape(1, c), (beta - mean * s).reshape(1, c)

    trans = {}
    for i in range(n_cfg):
        for j in range(n_cfg):
            if i == j:
                continue
            ci, cj = stream_dims[i], stream_dims[j]
            if i < j:  # down: depthwise kxk/stride-k (no bias), BN, 1x1 (bias), BN
                k = 2 * (j - i)
                w_dw = 0.3 * jax.random.normal(kg(), (k * k, ci), dtype=jnp.float32)
                s1, b1 = bn_folded(ci)
                w_pw = 0.3 * jax.random.normal(kg(), (ci, cj), dtype=jnp.float32)
                bias = 0.1 * jax.random.normal(kg(), (1, cj), dtype=jnp.float32)
                s2, b2 = bn_folded(cj)
                # fold depthwise*BN1 into the 1x1 weight, BN2 into columns, bias into a row
                wf = (w_dw[:, :, None] * s1.reshape(1, ci, 1) * w_pw[None, :, :])
                wf = wf.reshape(k * k * ci, cj) * s2
                bf = (b1 @ w_pw + bias) * s2 + b2
                w_aug = jnp.concatenate([wf, bf], axis=0).astype(jnp.bfloat16)
                trans[(i, j)] = dict(kind="down", k=k, w_dw=w_dw, s1=s1, b1=b1,
                                     w_pw=w_pw, bias=bias, s2=s2, b2=b2, w_aug=w_aug)
            else:      # up: 1x1 (bias), BN, bilinear upsample x 2*(i-j)
                w = 0.3 * jax.random.normal(kg(), (ci, cj), dtype=jnp.float32)
                bias = 0.1 * jax.random.normal(kg(), (1, cj), dtype=jnp.float32)
                sc, sh = bn_folded(cj)
                w_aug = jnp.concatenate([w * sc, bias * sc + sh],
                                        axis=0).astype(jnp.bfloat16)
                trans[(i, j)] = dict(kind="up", scale=2 * (i - j), w=w, bias=bias,
                                     s=sc, b=sh, w_aug=w_aug)

    return dict(
        trans=trans,
        class_token=0.2 * jax.random.normal(kg(), (1, 1, stream_dims[-1]), dtype=jnp.float32),
        pos_embedding=0.2 * jax.random.normal(kg(), (1, new_stream_tokens, stream_dims[-1]),
                                              dtype=jnp.float32),
    )


# ----------------------------------------------------------------------------- Pallas forward
def _extract_patches_aug(img, k):
    """(N,P,P,C) -> (N, 1+OH*OW, k*k*C + 1): non-overlapping kxk patches flattened
    (p, c)-major, plus a ones column (drives the folded bias row) and a leading
    all-zero row (the untouched class-token slot)."""
    n, p, _, c = img.shape
    oh = p // k
    patches = (img.reshape(n, oh, k, oh, k, c)
                  .transpose(0, 1, 3, 2, 4, 5)
                  .reshape(n, oh * oh, k * k * c))
    patches = jnp.concatenate([patches, jnp.ones((n, oh * oh, 1), jnp.float32)], axis=-1)
    return jnp.pad(patches, ((0, 0), (1, 0), (0, 0)))


def fusion_layer_forward(xs, params, stream_dims):
    """Functional equivalent of FusionLayer.forward using fused Pallas kernels."""
    n = xs[0].shape[0]
    n_cfg = len(stream_dims)
    n_in = len(xs)
    down_by_t = {t: [] for t in range(n_cfg)}   # [(patches_aug, w_aug)]
    up_by_t = {t: [] for t in range(n_cfg)}     # [(tok_aug, w_aug, u2_aug)]

    for i in range(n_in):
        ci = stream_dims[i]
        tok = xs[i][:, 1:, :]                   # drop class token -> (N, P*P, Ci)
        L = tok.shape[1]
        P = int(round(math.sqrt(L)))
        img = tok.reshape(n, P, P, ci)
        for j in range(n_cfg):
            if i == j:
                continue
            tp = params["trans"][(i, j)]
            if i < j:
                down_by_t[j].append((_extract_patches_aug(img, tp["k"]), tp["w_aug"]))
            else:
                tok_aug = jnp.concatenate(
                    [tok, jnp.ones((n, L, 1), jnp.float32)], axis=-1)
                up_by_t[j].append((tok_aug, tp["w_aug"],
                                   _bilinear_u2_aug(P, tp["scale"])))

    def fused(base, downs, ups):
        if len(downs) > 1:   # sources sharing a target share one matmul (concat along K)
            patches = jnp.concatenate([d[0] for d in downs], axis=-1)
            w_aug = jnp.concatenate([d[1] for d in downs], axis=0)
            downs = [(patches, w_aug)]
        return _fused_target_call(base, downs[0] if downs else None, ups)

    outs = [fused(xs[t], down_by_t[t], up_by_t[t]) for t in range(n_in)]

    # new stream(s): base = cat(class_token, zeros) + pos_embedding
    for t in range(n_in, n_cfg):
        if not (down_by_t[t] or up_by_t[t]):
            continue
        c_new = stream_dims[t]
        l_new = (down_by_t[t][0][0].shape[1] - 1 if down_by_t[t]
                 else up_by_t[t][0][2].shape[0] - 1)
        base = jnp.concatenate(
            [jnp.broadcast_to(params["class_token"], (n, 1, c_new)),
             jnp.zeros((n, l_new, c_new), jnp.float32)], axis=1)
        base = base + params["pos_embedding"]
        outs.append(fused(base, down_by_t[t], up_by_t[t]))
    return outs


# ----------------------------------------------------------------------------- pure-JAX reference
def fusion_layer_reference(xs, params, stream_dims):
    """Mirror of the PyTorch module (eval-mode BN), f32 math, exact erf GELU."""
    n = xs[0].shape[0]
    n_cfg = len(stream_dims)
    n_in = len(xs)
    deltas = {t: [] for t in range(n_cfg)}
    for i in range(n_in):
        ci = stream_dims[i]
        tok = xs[i][:, 1:, :]
        L = tok.shape[1]
        P = int(round(math.sqrt(L)))
        img = tok.reshape(n, P, P, ci)
        for j in range(n_cfg):
            if i == j:
                continue
            tp = params["trans"][(i, j)]
            cj = stream_dims[j]
            if i < j:
                k = tp["k"]
                oh = P // k
                patches = (img.reshape(n, oh, k, oh, k, ci)
                              .transpose(0, 1, 3, 2, 4, 5)
                              .reshape(n * oh * oh, k * k, ci))
                dw = jnp.sum(patches * tp["w_dw"][None], axis=1) * tp["s1"] + tp["b1"]
                y = (jnp.dot(dw, tp["w_pw"]) + tp["bias"]) * tp["s2"] + tp["b2"]
                deltas[j].append(y.reshape(n, oh * oh, cj))
            else:
                p_out = P * tp["scale"]
                u1 = _bilinear_matrix_1d(P, p_out)
                u2 = jnp.asarray(np.kron(u1, u1), jnp.float32)
                y = (jnp.dot(tok.reshape(n * L, ci), tp["w"]) + tp["bias"]) * tp["s"] + tp["b"]
                deltas[j].append(jnp.einsum("oi,nic->noc", u2, y.reshape(n, L, cj)))
    gelu = lambda v: 0.5 * v * (1.0 + jax.scipy.special.erf(v * _INV_SQRT2))
    outs = []
    for t in range(n_in):
        xt = xs[t]
        if deltas[t]:
            xt = xt.at[:, 1:, :].add(sum(deltas[t]))
        outs.append(gelu(xt))
    new_d = []
    for t in range(n_in, n_cfg):
        new_d.extend(deltas[t])
    if new_d:
        ns = sum(new_d)
        cls = jnp.broadcast_to(params["class_token"], (n, 1, ns.shape[-1]))
        outs.append(gelu(jnp.concatenate([cls, ns], axis=1) + params["pos_embedding"]))
    return outs


# ----------------------------------------------------------------------------- main
if __name__ == "__main__":
    # 3-stream schedule, 2 streams provided as input -> the forward creates the third.
    # Patch grids: 8x8, 4x4 (new stream: 2x2).
    stream_dims = [8, 16, 32]
    p0 = 8
    batch = 2

    key = jax.random.PRNGKey(0)
    k_x0, k_x1, k_par = jax.random.split(key, 3)
    x0 = jax.random.normal(k_x0, (batch, 1 + p0 * p0, stream_dims[0]), dtype=jnp.float32)
    x1 = jax.random.normal(k_x1, (batch, 1 + (p0 // 2) ** 2, stream_dims[1]), dtype=jnp.float32)
    xs = [x0, x1]

    params = make_params(k_par, stream_dims, new_stream_tokens=1 + (p0 // 4) ** 2)

    outs = fusion_layer_forward(xs, params, stream_dims)
    outs = jax.block_until_ready(outs)

    # sanity check against the unfolded f32 reference (tolerance covers bf16 MXU operands)
    refs = fusion_layer_reference(xs, params, stream_dims)
    expected_shapes = [(batch, 1 + p0 * p0, 8), (batch, 1 + (p0 // 2) ** 2, 16),
                       (batch, 1 + (p0 // 4) ** 2, 32)]
    assert len(outs) == 3
    for o, r, es in zip(outs, refs, expected_shapes):
        assert o.shape == es and o.dtype == jnp.float32
        assert bool(jnp.all(jnp.isfinite(o)))
        assert bool(jnp.allclose(o, r, rtol=2e-2, atol=2e-2)), float(jnp.max(jnp.abs(o - r)))

    print("KERNEL_OK")
</pallas_src>

<mosaic_0001>
module attributes {stable_mosaic.version = 11 : i64} {
  func.func @kernel(%arg0: i32, %arg1: memref<1x65x8xf32, #tpu.memory_space<vmem>>, %arg2: memref<1x16x17xf32, #tpu.memory_space<vmem>>, %arg3: memref<17x8xbf16, #tpu.memory_space<vmem>>, %arg4: memref<65x16xbf16, #tpu.memory_space<vmem>>, %arg5: memref<1x65x8xf32, #tpu.memory_space<vmem>>) attributes {dimension_semantics = [#tpu.dimension_semantics<parallel>], iteration_bounds = array<i64: 2>, scalar_prefetch = 0 : i64, scratch_operands = 0 : i64, tpu.core_type = #tpu.core_type<tc>, window_params = [{transform_indices = @transform_0, window_bounds = array<i64: 1, 65, 8>}, {transform_indices = @transform_1, window_bounds = array<i64: 1, 16, 17>}, {pipeline_mode = #tpu.pipeline_mode<synchronous>, transform_indices = @transform_2, window_bounds = array<i64: 17, 8>}, {pipeline_mode = #tpu.pipeline_mode<synchronous>, transform_indices = @transform_3, window_bounds = array<i64: 65, 16>}, {transform_indices = @transform_4, window_bounds = array<i64: 1, 65, 8>}]} {
    %c0 = arith.constant 0 : index
    %c0_0 = arith.constant 0 : index
    %c0_1 = arith.constant 0 : index
    %0 = vector.load %arg2[%c0, %c0_0, %c0_1] : memref<1x16x17xf32, #tpu.memory_space<vmem>>, vector<1x16x17xf32>
    %1 = vector.shape_cast %0 : vector<1x16x17xf32> to vector<16x17xf32>
    %2 = arith.truncf %1 : vector<16x17xf32> to vector<16x17xbf16>
    %c0_2 = arith.constant 0 : index
    %c0_3 = arith.constant 0 : index
    %3 = vector.load %arg3[%c0_2, %c0_3] : memref<17x8xbf16, #tpu.memory_space<vmem>>, vector<17x8xbf16>
    %cst = arith.constant dense<0.000000e+00> : vector<16x8xf32>
    %4 = tpu.matmul %2, %3, %cst {dimension_numbers = #tpu.dot_dimension_numbers<[1], [0], [0], [1], [0, 0, 1, 1], [], []>} : vector<16x17xbf16>, vector<17x8xbf16>, vector<16x8xf32> -> vector<16x8xf32>
    %c0_4 = arith.constant 0 : index
    %c0_5 = arith.constant 0 : index
    %5 = vector.load %arg4[%c0_4, %c0_5] : memref<65x16xbf16, #tpu.memory_space<vmem>>, vector<65x16xbf16>
    %6 = arith.truncf %4 : vector<16x8xf32> to vector<16x8xbf16>
    %cst_6 = arith.constant dense<0.000000e+00> : vector<65x8xf32>
    %7 = tpu.matmul %5, %6, %cst_6 {dimension_numbers = #tpu.dot_dimension_numbers<[1], [0], [0], [1], [0, 0, 1, 1], [], []>} : vector<65x16xbf16>, vector<16x8xbf16>, vector<65x8xf32> -> vector<65x8xf32>
    %c0_7 = arith.constant 0 : index
    %c0_8 = arith.constant 0 : index
    %c0_9 = arith.constant 0 : index
    %8 = vector.load %arg1[%c0_7, %c0_8, %c0_9] : memref<1x65x8xf32, #tpu.memory_space<vmem>>, vector<1x65x8xf32>
    %9 = vector.shape_cast %8 : vector<1x65x8xf32> to vector<65x8xf32>
    %10 = arith.addf %9, %7 : vector<65x8xf32>
    %cst_10 = arith.constant 0.707106769 : f32
    %11 = vector.broadcast %cst_10 : f32 to vector<65x8xf32>
    %12 = arith.mulf %10, %11 : vector<65x8xf32>
    %cst_11 = arith.constant 0.000000e+00 : f32
    %13 = vector.broadcast %cst_11 : f32 to vector<65x8xf32>
    %14 = arith.cmpf oge, %12, %13 : vector<65x8xf32>
    %cst_12 = arith.constant 1.000000e+00 : f32
    %cst_13 = arith.constant -1.000000e+00 : f32
    %15 = vector.broadcast %cst_12 : f32 to vector<65x8xf32>
    %16 = vector.broadcast %cst_13 : f32 to vector<65x8xf32>
    %17 = arith.select %14, %15, %16 : vector<65x8xi1>, vector<65x8xf32>
    %18 = math.absf %12 : vector<65x8xf32>
    %cst_14 = arith.constant 0.327591091 : f32
    %19 = vector.broadcast %cst_14 : f32 to vector<65x8xf32>
    %20 = arith.mulf %19, %18 : vector<65x8xf32>
    %cst_15 = arith.constant 1.000000e+00 : f32
    %21 = vector.broadcast %cst_15 : f32 to vector<65x8xf32>
    %22 = arith.addf %21, %20 : vector<65x8xf32>
    %23 = tpu.reciprocal %22 {approx = true} : vector<65x8xf32> -> vector<65x8xf32>
    %cst_16 = arith.constant 1.06140542 : f32
    %24 = vector.broadcast %cst_16 : f32 to vector<65x8xf32>
    %25 = arith.mulf %24, %23 : vector<65x8xf32>
    %cst_17 = arith.constant -1.45315206 : f32
    %26 = vector.broadcast %cst_17 : f32 to vector<65x8xf32>
    %27 = arith.addf %25, %26 : vector<65x8xf32>
    %28 = arith.mulf %27, %23 : vector<65x8xf32>
    %cst_18 = arith.constant 1.42141378 : f32
    %29 = vector.broadcast %cst_18 : f32 to vector<65x8xf32>
    %30 = arith.addf %28, %29 : vector<65x8xf32>
    %31 = arith.mulf %30, %23 : vector<65x8xf32>
    %cst_19 = arith.constant -0.284496725 : f32
    %32 = vector.broadcast %cst_19 : f32 to vector<65x8xf32>
    %33 = arith.addf %31, %32 : vector<65x8xf32>
    %34 = arith.mulf %33, %23 : vector<65x8xf32>
    %cst_20 = arith.constant 0.254829586 : f32
    %35 = vector.broadcast %cst_20 : f32 to vector<65x8xf32>
    %36 = arith.addf %34, %35 : vector<65x8xf32>
    %37 = arith.mulf %36, %23 : vector<65x8xf32>
    %cst_21 = arith.constant 0.000000e+00 : f32
    %38 = vector.broadcast %cst_21 : f32 to vector<65x8xf32>
    %39 = arith.subf %38, %18 : vector<65x8xf32>
    %40 = arith.mulf %39, %18 : vector<65x8xf32>
    %41 = math.exp %40 : vector<65x8xf32>
    %42 = arith.mulf %37, %41 : vector<65x8xf32>
    %cst_22 = arith.constant 1.000000e+00 : f32
    %43 = vector.broadcast %cst_22 : f32 to vector<65x8xf32>
    %44 = arith.subf %43, %42 : vector<65x8xf32>
    %45 = arith.mulf %17, %44 : vector<65x8xf32>
    %cst_23 = arith.constant 5.000000e-01 : f32
    %46 = vector.broadcast %cst_23 : f32 to vector<65x8xf32>
    %47 = arith.mulf %46, %10 : vector<65x8xf32>
    %cst_24 = arith.constant 1.000000e+00 : f32
    %48 = vector.broadcast %cst_24 : f32 to vector<65x8xf32>
    %49 = arith.addf %48, %45 : vector<65x8xf32>
    %50 = arith.mulf %47, %49 : vector<65x8xf32>
    %c0_25 = arith.constant 0 : index
    %c0_26 = arith.constant 0 : index
    %c0_27 = arith.constant 0 : index
    %51 = vector.load %arg5[%c0_25, %c0_26, %c0_27] : memref<1x65x8xf32, #tpu.memory_space<vmem>>, vector<1x65x8xf32>
    %52 = vector.shape_cast %51 : vector<1x65x8xf32> to vector<65x8xf32>
    %53 = vector.shape_cast %50 : vector<65x8xf32> to vector<1x65x8xf32>
    tpu.vector_store %arg5[%c0_25, %c0_26, %c0_27], %53 {strides = array<i32>} : memref<1x65x8xf32, #tpu.memory_space<vmem>>, vector<1x65x8xf32>,
    return
  }
  func.func @transform_0(%arg0: i32) -> (i32, i32, i32) {
    %c0_i32 = arith.constant 0 : i32
    %c0_i32_0 = arith.constant 0 : i32
    %c0_i32_1 = arith.constant 0 : i32
    return %arg0, %c0_i32, %c0_i32_0 : i32, i32, i32
  }
  func.func @transform_1(%arg0: i32) -> (i32, i32, i32) {
    %c0_i32 = arith.constant 0 : i32
    %c0_i32_0 = arith.constant 0 : i32
    %c0_i32_1 = arith.constant 0 : i32
    return %arg0, %c0_i32, %c0_i32_0 : i32, i32, i32
  }
  func.func @transform_2(%arg0: i32) -> (i32, i32) {
    %c0_i32 = arith.constant 0 : i32
    %c0_i32_0 = arith.constant 0 : i32
    %c0_i32_1 = arith.constant 0 : i32
    return %c0_i32, %c0_i32_0 : i32, i32
  }
  func.func @transform_3(%arg0: i32) -> (i32, i32) {
    %c0_i32 = arith.constant 0 : i32
    %c0_i32_0 = arith.constant 0 : i32
    %c0_i32_1 = arith.constant 0 : i32
    return %c0_i32, %c0_i32_0 : i32, i32
  }
  func.func @transform_4(%arg0: i32) -> (i32, i32, i32) {
    %c0_i32 = arith.constant 0 : i32
    %c0_i32_0 = arith.constant 0 : i32
    %c0_i32_1 = arith.constant 0 : i32
    return %arg0, %c0_i32, %c0_i32_0 : i32, i32, i32
  }
}

</mosaic_0001>

<llo_original>
// kernel: tpu_custom_call.1
$region0: #{tpu_custom_call.1}
  #allocation0 [shape = 'u32[]', space=smem, size = 0x4, offset = 0x4, fixed_abs, tag = 'smem constant byte address 0x4 - core index']
  #allocation1 [shape = 'u32[144,128]{1,0:T(1,128)}', space=vmem, size = 0x12000, scoped, tag = 'internal scratch']
  %s0 = inlined_call_operand.vmem [shape: f32[2,65,8], index: 0, kind: input, shape index: {}]
  %s1 = inlined_call_operand.vmem [shape: f32[2,16,17], index: 1, kind: input, shape index: {}]
  %s2 = inlined_call_operand.vmem [shape: bf16[17,8], index: 2, kind: input, shape index: {}]
  %s3 = inlined_call_operand.vmem [shape: bf16[65,16], index: 3, kind: input, shape index: {}]
  %s4 = inlined_call_operand.vmem [shape: f32[2,65,8], index: 4, kind: output, shape index: {}]
  %s5 = sld [smem:[#allocation0]]
  $region49: #{tpu_custom_call.1} parent=0
    _
  %s7 = ssub.s32 1, %s5
  %s8 = scalar_select 0, %s7, %s5
  loop: start=0, step=1, limit=4
  $region2: #{tpu_custom_call.1} parent=0 // loop_pre_header
    _
  $region3: #{tpu_custom_call.1} parent=0 // loop_header
    %s10 = sphi 0, %s14
    %p11 = scmp.ge.s32.totalorder %s10, 4
    %s20 = sphi 0, %s22
    %s23 = sphi 0, %s20
    %s24 = sphi 0, %s23
    %s40 = sphi 0, %s24
    %s46 = sphi 0, %s48
    %s49 = sphi 0, %s46
    %s50 = sphi 0, %s49
    %s66 = sphi 0, %s50
    %s70 = sphi 0, %s70
    %s72 = sphi 0, %s70
    %s73 = sphi 0, %s72
    %s87 = sphi 0, %s73
    %s91 = sphi 0, %s91
    %s93 = sphi 0, %s91
    %s94 = sphi 0, %s93
    %s108 = sphi 0, %s94
    %s114 = sphi 0, %s116
    %s117 = sphi 0, %s114
    %s118 = sphi 0, %s117
    %s134 = sphi 0, %s118
  $region4: #{tpu_custom_call.1} parent=0 // loop_header_branch
    %13 = sbr.rel (%p11) target = $region8
  $region5: #{tpu_custom_call.1} parent=0 // loop_body
    %s15 = ssub.s32 %s10, 1
    %s16 = ssub.s32 %s10, 2
    %s17 = sadd.s32 %s10, 1
    %s18 = ssub.s32 %s10, %s17
    %p19 = scmp.eq.s32.totalorder %s18, 0
    %s21 = sadd.s32 %s20, 1
    %s22 = scalar_select %p19, %s20, %s21
    %p25 = pneg %p19
    %p26 = scmp.eq.s32.totalorder %s10, 1
    %p27 = por %p25, %p26
    %p28 = scmp.ne.s32.totalorder %s20, %s23
    %p29 = scmp.eq.s32.totalorder %s10, 0
    %p30 = por %p28, %p29
    %p31 = scmp.ne.s32.totalorder %s20, %s23
    %p32 = scmp.eq.s32.totalorder %s15, 1
    %p33 = por %p31, %p32
    %p34 = scmp.ne.s32.totalorder %s23, %s24
    %p35 = scmp.eq.s32.totalorder %s15, 0
    %p36 = por %p34, %p35
    %p37 = scmp.ne.s32.totalorder %s23, %s24
    %p38 = scmp.eq.s32.totalorder %s16, 1
    %p39 = por %p37, %p38
    %p41 = scmp.ne.s32.totalorder %s24, %s40
    %p42 = scmp.eq.s32.totalorder %s16, 0
    %p43 = por %p41, %p42
    %s44 = ssub.s32 %s10, %s17
    %p45 = scmp.eq.s32.totalorder %s44, 0
    %s47 = sadd.s32 %s46, 1
    %s48 = scalar_select %p45, %s46, %s47
    %p51 = pneg %p45
    %p52 = scmp.eq.s32.totalorder %s10, 1
    %p53 = por %p51, %p52
    %p54 = scmp.ne.s32.totalorder %s46, %s49
    %p55 = scmp.eq.s32.totalorder %s10, 0
    %p56 = por %p54, %p55
    %p57 = scmp.ne.s32.totalorder %s46, %s49
    %p58 = scmp.eq.s32.totalorder %s15, 1
    %p59 = por %p57, %p58
    %p60 = scmp.ne.s32.totalorder %s49, %s50
    %p61 = scmp.eq.s32.totalorder %s15, 0
    %p62 = por %p60, %p61
    %p63 = scmp.ne.s32.totalorder %s49, %s50
    %p64 = scmp.eq.s32.totalorder %s16, 1
    %p65 = por %p63, %p64
    %p67 = scmp.ne.s32.totalorder %s50, %s66
    %p68 = scmp.eq.s32.totalorder %s16, 0
    %p69 = por %p67, %p68
    %s71 = sadd.s32 %s70, 1
    %p74 = scmp.eq.s32.totalorder %s10, 1
    %p75 = scmp.ne.s32.totalorder %s70, %s72
    %p76 = scmp.eq.s32.totalorder %s10, 0
    %p77 = por %p75, %p76
    %p78 = scmp.ne.s32.totalorder %s70, %s72
    %p79 = scmp.eq.s32.totalorder %s15, 1
    %p80 = por %p78, %p79
    %p81 = scmp.ne.s32.totalorder %s72, %s73
    %p82 = scmp.eq.s32.totalorder %s15, 0
    %p83 = por %p81, %p82
    %p84 = scmp.ne.s32.totalorder %s72, %s73
    %p85 = scmp.eq.s32.totalorder %s16, 1
    %p86 = por %p84, %p85
    %p88 = scmp.ne.s32.totalorder %s73, %s87
    %p89 = scmp.eq.s32.totalorder %s16, 0
    %p90 = por %p88, %p89
    %s92 = sadd.s32 %s91, 1
    %p95 = scmp.eq.s32.totalorder %s10, 1
    %p96 = scmp.ne.s32.totalorder %s91, %s93
    %p97 = scmp.eq.s32.totalorder %s10, 0
    %p98 = por %p96, %p97
    %p99 = scmp.ne.s32.totalorder %s91, %s93
    %p100 = scmp.eq.s32.totalorder %s15, 1
    %p101 = por %p99, %p100
    %p102 = scmp.ne.s32.totalorder %s93, %s94
    %p103 = scmp.eq.s32.totalorder %s15, 0
    %p104 = por %p102, %p103
    %p105 = scmp.ne.s32.totalorder %s93, %s94
    %p106 = scmp.eq.s32.totalorder %s16, 1
    %p107 = por %p105, %p106
    %p109 = scmp.ne.s32.totalorder %s94, %s108
    %p110 = scmp.eq.s32.totalorder %s16, 0
    %p111 = por %p109, %p110
    %s112 = ssub.s32 %s10, %s17
    %p113 = scmp.eq.s32.totalorder %s112, 0
    %s115 = sadd.s32 %s114, 1
    %s116 = scalar_select %p113, %s114, %s115
    %p119 = pneg %p113
    %p120 = scmp.eq.s32.totalorder %s10, 1
    %p121 = por %p119, %p120
    %p122 = scmp.ne.s32.totalorder %s114, %s117
    %p123 = scmp.eq.s32.totalorder %s10, 0
    %p124 = por %p122, %p123
    %p125 = scmp.ne.s32.totalorder %s114, %s117
    %p126 = scmp.eq.s32.totalorder %s15, 1
    %p127 = por %p125, %p126
    %p128 = scmp.ne.s32.totalorder %s117, %s118
    %p129 = scmp.eq.s32.totalorder %s15, 0
    %p130 = por %p128, %p129
    %p131 = scmp.ne.s32.totalorder %s117, %s118
    %p132 = scmp.eq.s32.totalorder %s16, 1
    %p133 = por %p131, %p132
    %p135 = scmp.ne.s32.totalorder %s118, %s134
    %p136 = scmp.eq.s32.totalorder %s16, 0
    %p137 = por %p135, %p136
    %p138 = scmp.le.s32.totalorder 1, %s10
    %p139 = scmp.lt.s32.totalorder %s10, 3
    %p140 = pnand %p138, %p139
    %p141 = pneg %p140
    // Predicated region
    $region9: #{tpu_custom_call.1} parent=5 // pred_check
      _
    $region10: #{tpu_custom_call.1} parent=5 // pred_check_branch
      %143 = sbr.rel (%p140) target = $region12
    $region11: #{tpu_custom_call.1} parent=5 // pred_region
      %s144 = ssub.s32 %s10, 1
      // Predicated region
      $region13: #{tpu_custom_call.1} parent=11 // pred_check
        %p145 = pneg %p83
      $region14: #{tpu_custom_call.1} parent=11 // pred_check_branch
        %147 = sbr.rel (%p145) target = $region16
      $region15: #{tpu_custom_call.1} parent=11 // pred_region
        _
      $region16: #{tpu_custom_call.1} parent=11 // pred_fallthru
        _
      // Predicated region
      $region17: #{tpu_custom_call.1} parent=11 // pred_check
        %p148 = pneg %p104
      $region18: #{tpu_custom_call.1} parent=11 // pred_check_branch
        %150 = sbr.rel (%p148) target = $region20
      $region19: #{tpu_custom_call.1} parent=11 // pred_region
        _
      $region20: #{tpu_custom_call.1} parent=11 // pred_fallthru
        _
    $region12: #{tpu_custom_call.1} parent=5 // pred_fallthru
      _
    %p151 = scmp.lt.s32.totalorder %s10, 2
    // Predicated region
    $region21: #{tpu_custom_call.1} parent=5 // pred_check
      %p152 = pneg %p151
    $region22: #{tpu_custom_call.1} parent=5 // pred_check_branch
      %154 = sbr.rel (%p152) target = $region24
    $region23: #{tpu_custom_call.1} parent=5 // pred_region
      // Predicated region
      $region25: #{tpu_custom_call.1} parent=23 // pred_check
        %p155 = pneg %p30
      $region26: #{tpu_custom_call.1} parent=23 // pred_check_branch
        %157 = sbr.rel (%p155) target = $region28
      $region27: #{tpu_custom_call.1} parent=23 // pred_region
        %p158 = scmp.lt.s32.totalorder %s10, 1
        %s159 = scalar_select %p158, %s10, 1
        %s160 = smul.addr %s159, 9
        %s161 = smul.addr %s160, 8
        %s162 = scalar_lea.vmem %s0, %s161
      $region28: #{tpu_custom_call.1} parent=23 // pred_fallthru
        _
      // Predicated region
      $region29: #{tpu_custom_call.1} parent=23 // pred_check
        %p163 = pneg %p56
      $region30: #{tpu_custom_call.1} parent=23 // pred_check_branch
        %165 = sbr.rel (%p163) target = $region32
      $region31: #{tpu_custom_call.1} parent=23 // pred_region
        %p166 = scmp.lt.s32.totalorder %s10, 1
        %s167 = scalar_select %p166, %s10, 1
        %s168 = smul.addr %s167, 2
        %s169 = smul.addr %s168, 8
        %s170 = scalar_lea.vmem %s1, %s169
      $region32: #{tpu_custom_call.1} parent=23 // pred_fallthru
        _
    $region24: #{tpu_custom_call.1} parent=5 // pred_fallthru
      _
    %p171 = scmp.le.s32.totalorder 1, %s10
    %p172 = scmp.lt.s32.totalorder %s10, 3
    %p173 = pnand %p171, %p172
    %p174 = pneg %p173
    // Predicated region
    $region33: #{tpu_custom_call.1} parent=5 // pred_check
      _
    $region34: #{tpu_custom_call.1} parent=5 // pred_check_branch
      %176 = sbr.rel (%p173) target = $region36
    $region35: #{tpu_custom_call.1} parent=5 // pred_region
      %s177 = ssub.s32 %s10, 1
      %p178 = scmp.lt.s32.totalorder %s15, 1
      %s179 = scalar_select %p178, %s15, 1
      %s180 = smul.addr %s179, 9
      %s181 = smul.addr %s180, 8
      %s182 = scalar_lea.vmem %s0, %s181
      %p183 = pneg %p36
      %p184 = pneg %p33
      %p185 = scmp.lt.s32.totalorder %s15, 1
      %s186 = scalar_select %p185, %s15, 1
      %s187 = smul.addr %s186, 2
      %s188 = smul.addr %s187, 8
      %s189 = scalar_lea.vmem %s1, %s188
      %p190 = pneg %p62
      %p191 = pneg %p59
      %p192 = pneg %p83
      %p193 = pneg %p80
      %p194 = pneg %p104
      %p195 = pneg %p101
      %p196 = pneg %p130
      %p197 = pneg %p127
      %p198 = scmp.lt.s32.totalorder %s15, 1
      %s199 = scalar_select %p198, %s15, 1
      %s200 = smul.addr %s199, 9
      %s201 = smul.addr %s200, 8
      %s202 = scalar_lea.vmem %s4, %s201
      %p203 = scmp.lt.s32.totalorder %s15, 1
      %s204 = scalar_select %p203, %s15, 1
      %s205 = smul.addr %s204, 9
      %s206 = smul.addr %s205, 8
      %s207 = scalar_lea.vmem %s0, %s206
      %p208 = scmp.lt.s32.totalorder %s15, 1
      %s209 = scalar_select %p208, %s15, 1
      %s210 = smul.addr %s209, 2
      %s211 = smul.addr %s210, 8
      %s212 = scalar_lea.vmem %s1, %s211
      %p213 = scmp.lt.s32.totalorder %s15, 1
      %s214 = scalar_select %p213, %s15, 1
      %s215 = smul.addr %s214, 9
      %s216 = smul.addr %s215, 8
      %s217 = scalar_lea.vmem %s4, %s216
      %v219 = vld [vmem:[%s212] sm:$0xff]
      %v220 = vld [vmem:[%s212 + $0x8] sm:$0xff]
      %v221 = vpack.c.bf16 %v220, %v219
      %v222 = vld [vmem:[%s2] sm:$0xf]
      %v223 = vld [vmem:[%s2 + $0x4] sm:$0xf]
      %v224 = vld [vmem:[%s2 + $0x8] sm:$0x1]
      %v228 = vunpack.c.l.b16 %v222
      %v229 = vunpack.c.l.b16 %v223
      %v230 = vunpack.c.l.b16 %v224
      %v231 = vpack.c.b16 %v229, %v228
      %v232 = vpack.c.b16 %v230, %v230
      %vm234 = vcmask 138240
      %v236 = vsel %vm234, %v221, 0
      %vm238 = vcmask 1040384
      %v239 = vsel 0, 4294967295, 65535
      %v240 = vsel %vm238, %v239, 0
      %v242 = vand.u32 %v232, %v240
      %244 = vmatprep.subr.bf16.mxu0 0
      %245 = vmatpush1.bf16.msra.mxu0 %v231
      %246 = vmatprep.subr.bf16.mxu0 0
      %247 = vmatpush1.bf16.msra.mxu0 %v242
      %248 = vmatprep.subr.bf16.mxu0 0
      %249 = vmatpush1.bf16.msra.mxu0 0
      %250 = vmatprep.subr.bf16.mxu0 0
      %251 = vmatpush1.bf16.msra.mxu0 0
      %252 = vmatprep.subr.bf16.mxu0 0
      %253 = vmatpush1.bf16.msra.mxu0 0
      %254 = vmatprep.subr.bf16.mxu0 0
      %255 = vmatpush1.bf16.msra.mxu0 0
      %256 = vmatprep.subr.bf16.mxu0 0
      %257 = vmatpush1.bf16.msra.mxu0 0
      %258 = vmatprep.subr.bf16.mxu0 0
      %259 = vmatpush1.bf16.msra.mxu0 0
      %260 = vmatprep.subr.bf16.mxu0 0
      %261 = vmatpush1.bf16.msra.mxu0 0
      %262 = vmatprep.subr.bf16.mxu0 0
      %263 = vmatpush1.bf16.msra.mxu0 0
      %264 = vmatprep.subr.bf16.mxu0 0
      %265 = vmatpush1.bf16.msra.mxu0 0
      %266 = vmatprep.subr.bf16.mxu0 0
      %267 = vmatpush1.bf16.msra.mxu0 0
      %268 = vmatprep.subr.bf16.mxu0 0
      %269 = vmatpush1.bf16.msra.mxu0 0
      %270 = vmatprep.subr.bf16.mxu0 0
      %271 = vmatpush1.bf16.msra.mxu0 0
      %272 = vmatprep.subr.bf16.mxu0 0
      %273 = vmatpush1.bf16.msra.mxu0 0
      %274 = vmatprep.subr.bf16.mxu0 0
      %275 = vmatpush1.bf16.msra.mxu0 0
      %276 = vmatprep.mubr.bf16.mxu0 0
      %277 = vmatmul.mubr.bf16.gmra.mrb[0].mxu0 %v236
      %v278 = vpop.f32.mrb[0].mxu0
      %v279 = vadd.f32 0.0, %v278
      %v280 = vpop.f32.mrb[0].mxu0
      %v281 = vpop.f32.mrb[0].mxu0
      %v282 = vadd.f32 0.0, %v281
      %v283 = vpop.f32.mrb[0].mxu0
      %284 = vdwg.mxu0
      %v285 = vld [vmem:[%s3] sm:$0xf]
      %v286 = vld [vmem:[%s3 + $0x4] sm:$0xf]
      %v287 = vld [vmem:[%s3 + $0x8] sm:$0xf]
      %v288 = vld [vmem:[%s3 + $0xc] sm:$0xf]
      %v289 = vld [vmem:[%s3 + $0x10] sm:$0xf]
      %v290 = vld [vmem:[%s3 + $0x14] sm:$0xf]
      %v291 = vld [vmem:[%s3 + $0x18] sm:$0xf]
      %v292 = vld [vmem:[%s3 + $0x1c] sm:$0xf]
      %v293 = vld [vmem:[%s3 + $0x20] sm:$0x1]
      %v294 = vpack.c.bf16 %v282, %v279
      %v304 = vunpack.c.l.b16 %v285
      %v305 = vunpack.c.l.b16 %v286
      %v306 = vunpack.c.l.b16 %v287
      %v307 = vunpack.c.l.b16 %v288
      %v308 = vunpack.c.l.b16 %v289
      %v309 = vunpack.c.l.b16 %v290
      %v310 = vunpack.c.l.b16 %v291
      %v311 = vunpack.c.l.b16 %v292
      %v312 = vunpack.c.l.b16 %v293
      %v313 = vpack.c.b16 %v305, %v304
      %v314 = vpack.c.b16 %v307, %v306
      %v315 = vpack.c.b16 %v309, %v308
      %v316 = vpack.c.b16 %v311, %v310
      %v317 = vpack.c.b16 %v312, %v312
      %vm318 = vcmask 130048
      %v320 = vsel %vm318, %v313, 0
      %v323 = vsel %vm318, %v314, 0
      %v326 = vsel %vm318, %v315, 0
      %v329 = vsel %vm318, %v316, 0
      %v332 = vsel %vm318, %v317, 0
      %334 = vmatprep.subr.bf16.mxu0 0
      %335 = vmatpush1.bf16.msra.mxu0 %v294
      %336 = vmatprep.subr.bf16.mxu0 0
      %337 = vmatpush1.bf16.msra.mxu0 0
      %338 = vmatprep.subr.bf16.mxu0 0
      %339 = vmatpush1.bf16.msra.mxu0 0
      %340 = vmatprep.subr.bf16.mxu0 0
      %341 = vmatpush1.bf16.msra.mxu0 0
      %342 = vmatprep.subr.bf16.mxu0 0
      %343 = vmatpush1.bf16.msra.mxu0 0
      %344 = vmatprep.subr.bf16.mxu0 0
      %345 = vmatpush1.bf16.msra.mxu0 0
      %346 = vmatprep.subr.bf16.mxu0 0
      %347 = vmatpush1.bf16.msra.mxu0 0
      %348 = vmatprep.subr.bf16.mxu0 0
      %349 = vmatpush1.bf16.msra.mxu0 0
      %350 = vmatprep.subr.bf16.mxu0 0
      %351 = vmatpush1.bf16.msra.mxu0 0
      %352 = vmatprep.subr.bf16.mxu0 0
      %353 = vmatpush1.bf16.msra.mxu0 0
      %354 = vmatprep.subr.bf16.mxu0 0
      %355 = vmatpush1.bf16.msra.mxu0 0
      %356 = vmatprep.subr.bf16.mxu0 0
      %357 = vmatpush1.bf16.msra.mxu0 0
      %358 = vmatprep.subr.bf16.mxu0 0
      %359 = vmatpush1.bf16.msra.mxu0 0
      %360 = vmatprep.subr.bf16.mxu0 0
      %361 = vmatpush1.bf16.msra.mxu0 0
      %362 = vmatprep.subr.bf16.mxu0 0
      %363 = vmatpush1.bf16.msra.mxu0 0
      %364 = vmatprep.subr.bf16.mxu0 0
      %365 = vmatpush1.bf16.msra.mxu0 0
      %366 = vmatprep.mubr.bf16.mxu0 0
      %367 = vmatmul.mubr.bf16.gmra.mrb[0].mxu0 %v320
      %v368 = vpop.f32.mrb[0].mxu0
      %v369 = vadd.f32 0.0, %v368
      %v370 = vpop.f32.mrb[0].mxu0
      %v371 = vpop.f32.mrb[0].mxu0
      %v372 = vadd.f32 0.0, %v371
      %v373 = vpop.f32.mrb[0].mxu0
      %374 = vmatprep.mubr.bf16.mxu0 0
      %375 = vmatmul.mubr.bf16.gmra.mrb[0].mxu0 %v323
      %v376 = vpop.f32.mrb[0].mxu0
      %v377 = vadd.f32 0.0, %v376
      %v378 = vpop.f32.mrb[0].mxu0
      %v379 = vpop.f32.mrb[0].mxu0
      %v380 = vadd.f32 0.0, %v379
      %v381 = vpop.f32.mrb[0].mxu0
      %382 = vmatprep.mubr.bf16.mxu0 0
      %383 = vmatmul.mubr.bf16.gmra.mrb[0].mxu0 %v326
      %v384 = vpop.f32.mrb[0].mxu0
      %v385 = vadd.f32 0.0, %v384
      %v386 = vpop.f32.mrb[0].mxu0
      %v387 = vpop.f32.mrb[0].mxu0
      %v388 = vadd.f32 0.0, %v387
      %v389 = vpop.f32.mrb[0].mxu0
      %390 = vmatprep.mubr.bf16.mxu0 0
      %391 = vmatmul.mubr.bf16.gmra.mrb[0].mxu0 %v329
      %v392 = vpop.f32.mrb[0].mxu0
      %v393 = vadd.f32 0.0, %v392
      %v394 = vpop.f32.mrb[0].mxu0
      %v395 = vpop.f32.mrb[0].mxu0
      %v396 = vadd.f32 0.0, %v395
      %v397 = vpop.f32.mrb[0].mxu0
      %398 = vmatprep.mubr.bf16.mxu0 0
      %399 = vmatmul.mubr.bf16.gmra.mrb[0].mxu0 %v332
      %v400 = vpop.f32.mrb[0].mxu0
      %v401 = vadd.f32 0.0, %v400
      %v402 = vpop.f32.mrb[0].mxu0
      %v403 = vpop.f32.mrb[0].mxu0
      %v404 = vpop.f32.mrb[0].mxu0
      %405 = vdwg.mxu0
      %v406 = vld [vmem:[%s207] sm:$0xff]
      %v407 = vld [vmem:[%s207 + $0x8] sm:$0xff]
      %v408 = vld [vmem:[%s207 + $0x10] sm:$0xff]
      %v409 = vld [vmem:[%s207 + $0x18] sm:$0xff]
      %v410 = vld [vmem:[%s207 + $0x20] sm:$0xff]
      %v411 = vld [vmem:[%s207 + $0x28] sm:$0xff]
      %v412 = vld [vmem:[%s207 + $0x30] sm:$0xff]
      %v413 = vld [vmem:[%s207 + $0x38] sm:$0xff]
      %v414 = vld [vmem:[%s207 + $0x40] sm:$0x1]
      %v415 = vadd.f32 %v406, %v369
      %v416 = vadd.f32 %v407, %v372
      %v417 = vadd.f32 %v408, %v377
      %v418 = vadd.f32 %v409, %v380
      %v419 = vadd.f32 %v410, %v385
      %v420 = vadd.f32 %v411, %v388
      %v421 = vadd.f32 %v412, %v393
      %v422 = vadd.f32 %v413, %v396
      %v423 = vadd.f32 %v414, %v401
      %v424 = vmul.f32 %v415, 0.70710677
      %v425 = vmul.f32 %v416, 0.70710677
      %v426 = vmul.f32 %v417, 0.70710677
      %v427 = vmul.f32 %v418, 0.70710677
      %v428 = vmul.f32 %v419, 0.70710677
      %v429 = vmul.f32 %v420, 0.70710677
      %v430 = vmul.f32 %v421, 0.70710677
      %v431 = vmul.f32 %v422, 0.70710677
      %v432 = vmul.f32 %v423, 0.70710677
      %vm433 = vcmp.ge.f32.partialorder %v424, 0.0
      %vm434 = vcmp.ge.f32.partialorder %v425, 0.0
      %vm435 = vcmp.ge.f32.partialorder %v426, 0.0
      %vm436 = vcmp.ge.f32.partialorder %v427, 0.0
      %vm437 = vcmp.ge.f32.partialorder %v428, 0.0
      %vm438 = vcmp.ge.f32.partialorder %v429, 0.0
      %vm439 = vcmp.ge.f32.partialorder %v430, 0.0
      %vm440 = vcmp.ge.f32.partialorder %v431, 0.0
      %vm441 = vcmp.ge.f32.partialorder %v432, 0.0
      %v442 = vsel %vm433, 1.0, -1.0
      %v443 = vsel %vm434, 1.0, -1.0
      %v444 = vsel %vm435, 1.0, -1.0
      %v445 = vsel %vm436, 1.0, -1.0
      %v446 = vsel %vm437, 1.0, -1.0
      %v447 = vsel %vm438, 1.0, -1.0
      %v448 = vsel %vm439, 1.0, -1.0
      %v449 = vsel %vm440, 1.0, -1.0
      %v450 = vsel %vm441, 1.0, -1.0
      %v451 = vand.u32 2147483647, %v424
      %v452 = vand.u32 2147483647, %v425
      %v453 = vand.u32 2147483647, %v426
      %v454 = vand.u32 2147483647, %v427
      %v455 = vand.u32 2147483647, %v428
      %v456 = vand.u32 2147483647, %v429
      %v457 = vand.u32 2147483647, %v430
      %v458 = vand.u32 2147483647, %v431
      %v459 = vand.u32 2147483647, %v432
      %v460 = vmul.f32 %v451, 0.3275911
      %v461 = vmul.f32 %v452, 0.3275911
      %v462 = vmul.f32 %v453, 0.3275911
      %v463 = vmul.f32 %v454, 0.3275911
      %v464 = vmul.f32 %v455, 0.3275911
      %v465 = vmul.f32 %v456, 0.3275911
      %v466 = vmul.f32 %v457, 0.3275911
      %v467 = vmul.f32 %v458, 0.3275911
      %v468 = vmul.f32 %v459, 0.3275911
      %v469 = vadd.f32 %v460, 1.0
      %v470 = vadd.f32 %v461, 1.0
      %v471 = vadd.f32 %v462, 1.0
      %v472 = vadd.f32 %v463, 1.0
      %v473 = vadd.f32 %v464, 1.0
      %v474 = vadd.f32 %v465, 1.0
      %v475 = vadd.f32 %v466, 1.0
      %v476 = vadd.f32 %v467, 1.0
      %v477 = vadd.f32 %v468, 1.0
      %v478 = vrcp.pop %v469
      %v479 = vrcp.pop %v470
      %v480 = vrcp.pop %v471
      %v481 = vrcp.pop %v472
      %v482 = vrcp.pop %v473
      %v483 = vrcp.pop %v474
      %v484 = vrcp.pop %v475
      %v485 = vrcp.pop %v476
      %v486 = vrcp.pop %v477
      %v487 = vmul.f32 %v478, 1.0614054
      %v488 = vmul.f32 %v479, 1.0614054
      %v489 = vmul.f32 %v480, 1.0614054
      %v490 = vmul.f32 %v481, 1.0614054
      %v491 = vmul.f32 %v482, 1.0614054
      %v492 = vmul.f32 %v483, 1.0614054
      %v493 = vmul.f32 %v484, 1.0614054
      %v494 = vmul.f32 %v485, 1.0614054
      %v495 = vmul.f32 %v486, 1.0614054
      %v496 = vadd.f32 %v487, -1.4531521
      %v497 = vadd.f32 %v488, -1.4531521
      %v498 = vadd.f32 %v489, -1.4531521
      %v499 = vadd.f32 %v490, -1.4531521
      %v500 = vadd.f32 %v491, -1.4531521
      %v501 = vadd.f32 %v492, -1.4531521
      %v502 = vadd.f32 %v493, -1.4531521
      %v503 = vadd.f32 %v494, -1.4531521
      %v504 = vadd.f32 %v495, -1.4531521
      %v505 = vmul.f32 %v496, %v478
      %v506 = vmul.f32 %v497, %v479
      %v507 = vmul.f32 %v498, %v480
      %v508 = vmul.f32 %v499, %v481
      %v509 = vmul.f32 %v500, %v482
      %v510 = vmul.f32 %v501, %v483
      %v511 = vmul.f32 %v502, %v484
      %v512 = vmul.f32 %v503, %v485
      %v513 = vmul.f32 %v504, %v486
      %v514 = vadd.f32 %v505, 1.4214138
      %v515 = vadd.f32 %v506, 1.4214138
      %v516 = vadd.f32 %v507, 1.4214138
      %v517 = vadd.f32 %v508, 1.4214138
      %v518 = vadd.f32 %v509, 1.4214138
      %v519 = vadd.f32 %v510, 1.4214138
      %v520 = vadd.f32 %v511, 1.4214138
      %v521 = vadd.f32 %v512, 1.4214138
      %v522 = vadd.f32 %v513, 1.4214138
      %v523 = vmul.f32 %v514, %v478
      %v524 = vmul.f32 %v515, %v479
      %v525 = vmul.f32 %v516, %v480
      %v526 = vmul.f32 %v517, %v481
      %v527 = vmul.f32 %v518, %v482
      %v528 = vmul.f32 %v519, %v483
      %v529 = vmul.f32 %v520, %v484
      %v530 = vmul.f32 %v521, %v485
      %v531 = vmul.f32 %v522, %v486
      %v532 = vadd.f32 %v523, -0.28449672
      %v533 = vadd.f32 %v524, -0.28449672
      %v534 = vadd.f32 %v525, -0.28449672
      %v535 = vadd.f32 %v526, -0.28449672
      %v536 = vadd.f32 %v527, -0.28449672
      %v537 = vadd.f32 %v528, -0.28449672
      %v538 = vadd.f32 %v529, -0.28449672
      %v539 = vadd.f32 %v530, -0.28449672
      %v540 = vadd.f32 %v531, -0.28449672
      %v541 = vmul.f32 %v532, %v478
      %v542 = vmul.f32 %v533, %v479
      %v543 = vmul.f32 %v534, %v480
      %v544 = vmul.f32 %v535, %v481
      %v545 = vmul.f32 %v536, %v482
      %v546 = vmul.f32 %v537, %v483
      %v547 = vmul.f32 %v538, %v484
      %v548 = vmul.f32 %v539, %v485
      %v549 = vmul.f32 %v540, %v486
      %v550 = vadd.f32 %v541, 0.2548296
      %v551 = vadd.f32 %v542, 0.2548296
      %v552 = vadd.f32 %v543, 0.2548296
      %v553 = vadd.f32 %v544, 0.2548296
      %v554 = vadd.f32 %v545, 0.2548296
      %v555 = vadd.f32 %v546, 0.2548296
      %v556 = vadd.f32 %v547, 0.2548296
      %v557 = vadd.f32 %v548, 0.2548296
      %v558 = vadd.f32 %v549, 0.2548296
      %v559 = vmul.f32 %v550, %v478
      %v560 = vmul.f32 %v551, %v479
      %v561 = vmul.f32 %v552, %v480
      %v562 = vmul.f32 %v553, %v481
      %v563 = vmul.f32 %v554, %v482
      %v564 = vmul.f32 %v555, %v483
      %v565 = vmul.f32 %v556, %v484
      %v566 = vmul.f32 %v557, %v485
      %v567 = vmul.f32 %v558, %v486
      %v568 = vsub.f32 0.0, %v451
      %v569 = vsub.f32 0.0, %v452
      %v570 = vsub.f32 0.0, %v453
      %v571 = vsub.f32 0.0, %v454
      %v572 = vsub.f32 0.0, %v455
      %v573 = vsub.f32 0.0, %v456
      %v574 = vsub.f32 0.0, %v457
      %v575 = vsub.f32 0.0, %v458
      %v576 = vsub.f32 0.0, %v459
      %v577 = vmul.f32 %v568, %v451
      %v578 = vmul.f32 %v569, %v452
      %v579 = vmul.f32 %v570, %v453
      %v580 = vmul.f32 %v571, %v454
      %v581 = vmul.f32 %v572, %v455
      %v582 = vmul.f32 %v573, %v456
      %v583 = vmul.f32 %v574, %v457
      %v584 = vmul.f32 %v575, %v458
      %v585 = vmul.f32 %v576, %v459
      %v586 = vmul.f32 %v577, 1.442695
      %v587 = vpow.pop %v586
      %v588 = vmul.f32 %v578, 1.442695
      %v589 = vpow.pop %v588
      %v590 = vmul.f32 %v579, 1.442695
      %v591 = vpow.pop %v590
      %v592 = vmul.f32 %v580, 1.442695
      %v593 = vpow.pop %v592
      %v594 = vmul.f32 %v581, 1.442695
      %v595 = vpow.pop %v594
      %v596 = vmul.f32 %v582, 1.442695
      %v597 = vpow.pop %v596
      %v598 = vmul.f32 %v583, 1.442695
      %v599 = vpow.pop %v598
      %v600 = vmul.f32 %v584, 1.442695
      %v601 = vpow.pop %v600
      %v602 = vmul.f32 %v585, 1.442695
      %v603 = vpow.pop %v602
      %v604 = vmul.f32 %v559, %v587
      %v605 = vmul.f32 %v560, %v589
      %v606 = vmul.f32 %v561, %v591
      %v607 = vmul.f32 %v562, %v593
      %v608 = vmul.f32 %v563, %v595
      %v609 = vmul.f32 %v564, %v597
      %v610 = vmul.f32 %v565, %v599
      %v611 = vmul.f32 %v566, %v601
      %v612 = vmul.f32 %v567, %v603
      %v613 = vsub.f32 1.0, %v604
      %v614 = vsub.f32 1.0, %v605
      %v615 = vsub.f32 1.0, %v606
      %v616 = vsub.f32 1.0, %v607
      %v617 = vsub.f32 1.0, %v608
      %v618 = vsub.f32 1.0, %v609
      %v619 = vsub.f32 1.0, %v610
      %v620 = vsub.f32 1.0, %v611
      %v621 = vsub.f32 1.0, %v612
      %v622 = vmul.f32 %v442, %v613
      %v623 = vmul.f32 %v443, %v614
      %v624 = vmul.f32 %v444, %v615
      %v625 = vmul.f32 %v445, %v616
      %v626 = vmul.f32 %v446, %v617
      %v627 = vmul.f32 %v447, %v618
      %v628 = vmul.f32 %v448, %v619
      %v629 = vmul.f32 %v449, %v620
      %v630 = vmul.f32 %v450, %v621
      %v631 = vmul.f32 %v415, 0.5
      %v632 = vmul.f32 %v416, 0.5
      %v633 = vmul.f32 %v417, 0.5
      %v634 = vmul.f32 %v418, 0.5
      %v635 = vmul.f32 %v419, 0.5
      %v636 = vmul.f32 %v420, 0.5
      %v637 = vmul.f32 %v421, 0.5
      %v638 = vmul.f32 %v422, 0.5
      %v639 = vmul.f32 %v423, 0.5
      %v640 = vadd.f32 %v622, 1.0
      %v641 = vadd.f32 %v623, 1.0
      %v642 = vadd.f32 %v624, 1.0
      %v643 = vadd.f32 %v625, 1.0
      %v644 = vadd.f32 %v626, 1.0
      %v645 = vadd.f32 %v627, 1.0
      %v646 = vadd.f32 %v628, 1.0
      %v647 = vadd.f32 %v629, 1.0
      %v648 = vadd.f32 %v630, 1.0
      %v649 = vmul.f32 %v631, %v640
      %v650 = vmul.f32 %v632, %v641
      %v651 = vmul.f32 %v633, %v642
      %v652 = vmul.f32 %v634, %v643
      %v653 = vmul.f32 %v635, %v644
      %v654 = vmul.f32 %v636, %v645
      %v655 = vmul.f32 %v637, %v646
      %v656 = vmul.f32 %v638, %v647
      %v657 = vmul.f32 %v639, %v648
      %vm658 = vcmask 64512
      %659 = vst.msk [vmem:[%s217] sm:$0xff] %vm658, %v649
      %660 = vst.msk [vmem:[%s217 + $0x8] sm:$0xff] %vm658, %v650
      %661 = vst.msk [vmem:[%s217 + $0x10] sm:$0xff] %vm658, %v651
      %662 = vst.msk [vmem:[%s217 + $0x18] sm:$0xff] %vm658, %v652
      %663 = vst.msk [vmem:[%s217 + $0x20] sm:$0xff] %vm658, %v653
      %664 = vst.msk [vmem:[%s217 + $0x28] sm:$0xff] %vm658, %v654
      %665 = vst.msk [vmem:[%s217 + $0x30] sm:$0xff] %vm658, %v655
      %666 = vst.msk [vmem:[%s217 + $0x38] sm:$0xff] %vm658, %v656
      %vm667 = vcmask 57344
      %668 = vst.msk [vmem:[%s217 + $0x40] sm:$0x1] %vm667, %v657
      %p669 = scmp.lt.s32.totalorder %s15, 1
      %s670 = scalar_select %p669, %s15, 1
      %s671 = smul.addr %s670, 9
      %s672 = smul.addr %s671, 8
      %s673 = scalar_lea.vmem %s4, %s672
      // Predicated region
      $region37: #{tpu_custom_call.1} parent=35 // pred_check
        %p674 = pneg %p127
      $region38: #{tpu_custom_call.1} parent=35 // pred_check_branch
        %676 = sbr.rel (%p674) target = $region40
      $region39: #{tpu_custom_call.1} parent=35 // pred_region
        _
      $region40: #{tpu_custom_call.1} parent=35 // pred_fallthru
        _
    $region36: #{tpu_custom_call.1} parent=5 // pred_fallthru
      _
    %p677 = scmp.le.s32.totalorder 2, %s10
    // Predicated region
    $region41: #{tpu_custom_call.1} parent=5 // pred_check
      %p678 = pneg %p677
    $region42: #{tpu_custom_call.1} parent=5 // pred_check_branch
      %680 = sbr.rel (%p678) target = $region44
    $region43: #{tpu_custom_call.1} parent=5 // pred_region
      %s681 = ssub.s32 %s10, 2
      // Predicated region
      $region45: #{tpu_custom_call.1} parent=43 // pred_check
        %p682 = pneg %p133
      $region46: #{tpu_custom_call.1} parent=43 // pred_check_branch
        %684 = sbr.rel (%p682) target = $region48
      $region47: #{tpu_custom_call.1} parent=43 // pred_region
        %p685 = scmp.lt.s32.totalorder %s16, 1
        %s686 = scalar_select %p685, %s16, 1
        %s687 = smul.addr %s686, 9
        %s688 = smul.addr %s687, 8
        %s689 = scalar_lea.vmem %s4, %s688
      $region48: #{tpu_custom_call.1} parent=43 // pred_fallthru
        _
    $region44: #{tpu_custom_call.1} parent=5 // pred_fallthru
      _
  $region6: #{tpu_custom_call.1} parent=0 // loop_footer
    %s14 = sadd.s32 1, %s10
  $region7: #{tpu_custom_call.1} parent=0 // loop_footer_branch
    %9 = sbr.rel target = $region3
  $region8: #{tpu_custom_call.1} parent=0 // loop_exit
    _

</llo_original>
